<compile_context>
chip_gen: v6e
topology: v6e:2x2x1
jax: 0.10.0
libtpu: 0.0.40
codegen_flags: <defaults>
</compile_context>

<pallas_src>
import functools

import jax
import jax.numpy as jnp
from jax.experimental import pallas as pl
from jax.experimental.pallas import tpu as pltpu


def _round_up(x, m):
    return (x + m - 1) // m * m


# ----------------------------------------------------------------------------
# Kernel: one (batch_tile, vocab_tile) grid step
# ----------------------------------------------------------------------------
def _word_avg_kernel(ids_ref, emb_ref, w_ref, b_ref, out_ref, acc_ref, *, inv_t):
    """
    ids_ref : (B_TILE, T)       int32  token ids for this batch tile (resident)
    emb_ref : (V_TILE, E_pad)   float  vocab slice of the embedding table
    w_ref   : (E_pad, O_pad)    float  fc weight, transposed (resident)
    b_ref   : (1, O_pad)        float  fc bias (resident)
    out_ref : (B_TILE, O_pad)   float  logits, written on the last vocab step
    acc_ref : (B_TILE, E_pad)   f32    running sum_t emb[ids[:, t]]
    """
    vi = pl.program_id(1)

    @pl.when(vi == 0)
    def _():
        acc_ref[...] = jnp.zeros_like(acc_ref)

    b_tile, seq_len = ids_ref.shape
    v_tile = emb_ref.shape[0]

    ids = ids_ref[...]                                             # (Bt, T) int32
    v_base = vi * v_tile
    # V on lanes, B on sublanes -> lane-dense compare/accumulate on the VPU.
    vocab_ids = jax.lax.broadcasted_iota(jnp.int32, (b_tile, v_tile), 1) + v_base

    # counts[b, v] = #{t : ids[b, t] == v + v_base}, accumulated one timestep
    # at a time so the working set stays 2D (never a (T, B, V) one-hot).
    # Counts are exact integers <= T, so they are exact in bf16 for T <= 256
    # (pass a bf16 embedding table to get the full bf16 MXU rate).
    cdtype = emb_ref.dtype
    counts = jnp.zeros((b_tile, v_tile), dtype=cdtype)
    for t in range(seq_len):                      # static unroll (short T)
        counts = counts + (ids[:, t:t + 1] == vocab_ids).astype(cdtype)

    # Partial embedding-sum for this vocab tile, on the MXU.
    acc_ref[...] += jnp.dot(counts, emb_ref[...],
                            preferred_element_type=jnp.float32)

    # Last vocab step: fold the 1/T mean scale into the tiny logits and apply
    # the fused Linear; single lane-dense (B_TILE, O_pad) store.
    @pl.when(vi == pl.num_programs(1) - 1)
    def _():
        pooled_sum = acc_ref[...]                                  # (Bt, E_pad)
        logits = (jnp.dot(pooled_sum.astype(w_ref.dtype), w_ref[...],
                          preferred_element_type=jnp.float32) * inv_t
                  + b_ref[...])                                    # (Bt, O_pad)
        out_ref[...] = logits.astype(out_ref.dtype)


# ----------------------------------------------------------------------------
# Wrapper: padding, tiling, pallas_call
# ----------------------------------------------------------------------------
def word_avg_forward(text, embedding, fc_w, fc_b, *,
                     batch_tile=128, vocab_tile=512):
    """WordAVGModel forward: embedding -> mean over seq -> Linear.

    text      : (T, B) integer token ids (seq-major, like the PyTorch module)
    embedding : (V, E) embedding table (padding_idx row already zeroed)
    fc_w      : (O, E) fc weight (PyTorch layout)
    fc_b      : (O,)   fc bias
    returns   : (B, O) logits
    """
    seq_len, batch = text.shape
    vocab, emb_dim = embedding.shape
    out_dim = fc_w.shape[0]
    dtype = embedding.dtype

    # --- pad to TPU-friendly shapes (zero padding keeps results exact) ------
    b_tile = min(batch_tile, _round_up(batch, 8))        # sublane multiple
    b_pad = _round_up(batch, b_tile)
    v_tile = min(vocab_tile, _round_up(vocab, 128))      # lane multiple
    v_pad = _round_up(vocab, v_tile)
    e_pad = _round_up(emb_dim, 128)
    o_pad = _round_up(out_dim, 128)

    ids = jnp.pad(text.T.astype(jnp.int32), ((0, b_pad - batch), (0, 0)))
    emb = jnp.pad(embedding, ((0, v_pad - vocab), (0, e_pad - emb_dim)))
    w_t = jnp.pad(fc_w.T.astype(dtype),
                  ((0, e_pad - emb_dim), (0, o_pad - out_dim)))
    b_row = jnp.pad(fc_b.astype(dtype).reshape(1, out_dim),
                    ((0, 0), (0, o_pad - out_dim)))

    grid = (b_pad // b_tile, v_pad // v_tile)

    # VMEM budget: double-buffered blocks + f32 accumulator + headroom, kept
    # comfortably under v7x's 64 MiB physical VMEM.
    isz = jnp.dtype(dtype).itemsize
    block_bytes = (b_tile * seq_len * 4            # ids
                   + v_tile * e_pad * isz          # emb tile
                   + e_pad * o_pad * isz           # fc weight
                   + o_pad * isz                   # fc bias
                   + b_tile * o_pad * isz)         # out
    vmem_limit = int(min(max(2 * block_bytes + b_tile * e_pad * 4 + (4 << 20),
                             16 << 20),
                         48 << 20))

    out = pl.pallas_call(
        functools.partial(_word_avg_kernel, inv_t=1.0 / seq_len),
        out_shape=jax.ShapeDtypeStruct((b_pad, o_pad), dtype),
        grid=grid,
        in_specs=[
            pl.BlockSpec((b_tile, seq_len), lambda bi, vi: (bi, 0)),  # ids
            pl.BlockSpec((v_tile, e_pad), lambda bi, vi: (vi, 0)),    # emb tile
            pl.BlockSpec((e_pad, o_pad), lambda bi, vi: (0, 0)),      # fc weight
            pl.BlockSpec((1, o_pad), lambda bi, vi: (0, 0)),          # fc bias
        ],
        out_specs=pl.BlockSpec((b_tile, o_pad), lambda bi, vi: (bi, 0)),
        scratch_shapes=[pltpu.VMEM((b_tile, e_pad), jnp.float32)],
        compiler_params=pltpu.CompilerParams(
            dimension_semantics=("parallel", "arbitrary"),
            vmem_limit_bytes=vmem_limit),
    )(ids, emb, w_t, b_row)

    return out[:batch, :out_dim]


# ----------------------------------------------------------------------------
# Demo / correctness check
# ----------------------------------------------------------------------------
if __name__ == "__main__":
    VOCAB_SIZE = 100
    EMBEDDING_DIM = 32
    OUTPUT_DIM = 1
    PAD_IDX = 1
    SEQ_LEN = 8
    BATCH = 2

    key = jax.random.PRNGKey(0)
    k_emb, k_w, k_b, k_txt = jax.random.split(key, 4)

    # Parameters (shapes match the PyTorch module).
    embedding = jax.random.normal(k_emb, (VOCAB_SIZE, EMBEDDING_DIM),
                                  jnp.float32) * 0.1
    embedding = embedding.at[PAD_IDX].set(0.0)   # padding_idx row is zero

    bound = 1.0 / (EMBEDDING_DIM ** 0.5)
    fc_w = jax.random.uniform(k_w, (OUTPUT_DIM, EMBEDDING_DIM), jnp.float32,
                              -bound, bound)
    fc_b = jax.random.uniform(k_b, (OUTPUT_DIM,), jnp.float32, -bound, bound)

    # Inputs: (seq_len, batch) int token ids.
    text = jax.random.randint(k_txt, (SEQ_LEN, BATCH), 0, VOCAB_SIZE,
                              dtype=jnp.int32)

    fwd = jax.jit(word_avg_forward)
    out = jax.block_until_ready(fwd(text, embedding, fc_w, fc_b))
    assert out.shape == (BATCH, OUTPUT_DIM), out.shape

    # Pure-JAX reference (embedding gather -> mean over seq -> linear).
    emb_lookup = jnp.take(embedding, text, axis=0)   # (T, B, E)
    pooled_ref = jnp.mean(emb_lookup, axis=0)        # (B, E)
    ref = pooled_ref @ fc_w.T + fc_b                 # (B, O)
    assert jnp.allclose(out, ref, atol=1e-5, rtol=1e-4), (out, ref)

    print("KERNEL_OK")
</pallas_src>

<mosaic_0001>
module attributes {stable_mosaic.version = 11 : i64} {
  func.func @_word_avg_kernel(%arg0: i32, %arg1: i32, %arg2: memref<8x8xi32, #tpu.memory_space<vmem>>, %arg3: memref<128x128xf32, #tpu.memory_space<vmem>>, %arg4: memref<128x128xf32, #tpu.memory_space<vmem>>, %arg5: memref<1x128xf32, #tpu.memory_space<vmem>>, %arg6: memref<8x128xf32, #tpu.memory_space<vmem>>, %arg7: memref<8x128xf32, #tpu.memory_space<vmem>>) attributes {dimension_semantics = [#tpu.dimension_semantics<parallel>, #tpu.dimension_semantics<arbitrary>], iteration_bounds = array<i64: 1, 1>, scalar_prefetch = 0 : i64, scratch_operands = 1 : i64, tpu.core_type = #tpu.core_type<tc>, window_params = [{transform_indices = @transform_0, window_bounds = array<i64: 8, 8>}, {transform_indices = @transform_1, window_bounds = array<i64: 128, 128>}, {pipeline_mode = #tpu.pipeline_mode<synchronous>, transform_indices = @transform_2, window_bounds = array<i64: 128, 128>}, {pipeline_mode = #tpu.pipeline_mode<synchronous>, transform_indices = @transform_3, window_bounds = array<i64: 1, 128>}, {transform_indices = @transform_4, window_bounds = array<i64: 8, 128>}]} {
    %c0_i32 = arith.constant 0 : i32
    %0 = arith.cmpi eq, %arg1, %c0_i32 : i32
    %1 = arith.extui %0 : i1 to i32
    %c0_i32_0 = arith.constant 0 : i32
    %2 = arith.cmpi ne, %1, %c0_i32_0 : i32
    scf.if %2 {
      %cst_11 = arith.constant 0.000000e+00 : f32
      %65 = vector.broadcast %cst_11 : f32 to vector<8x128xf32>
      %c0_12 = arith.constant 0 : index
      %c0_13 = arith.constant 0 : index
      %66 = vector.load %arg7[%c0_12, %c0_13] : memref<8x128xf32, #tpu.memory_space<vmem>>, vector<8x128xf32>
      tpu.vector_store %arg7[%c0_12, %c0_13], %65 {strides = array<i32>} : memref<8x128xf32, #tpu.memory_space<vmem>>, vector<8x128xf32>,
    } else {
    }
    %c0 = arith.constant 0 : index
    %c0_1 = arith.constant 0 : index
    %3 = vector.load %arg2[%c0, %c0_1] : memref<8x8xi32, #tpu.memory_space<vmem>>, vector<8x8xi32>
    %c128_i32 = arith.constant 128 : i32
    %4 = arith.muli %arg1, %c128_i32 : i32
    %5 = tpu.iota {dimensions = array<i32: 1>} : vector<8x128xi32>
    %6 = vector.broadcast %4 : i32 to vector<8x128xi32>
    %7 = arith.addi %5, %6 : vector<8x128xi32>
    %cst = arith.constant 0.000000e+00 : f32
    %8 = vector.broadcast %cst : f32 to vector<8x128xf32>
    %9 = vector.extract_strided_slice %3 {offsets = [0, 0], sizes = [8, 1], strides = [1, 1]} : vector<8x8xi32> to vector<8x1xi32>
    %10 = vector.broadcast %9 : vector<8x1xi32> to vector<8x128xi32>
    %11 = arith.cmpi eq, %10, %7 : vector<8x128xi32>
    %12 = arith.extui %11 : vector<8x128xi1> to vector<8x128xi32>
    %13 = arith.sitofp %12 : vector<8x128xi32> to vector<8x128xf32>
    %14 = arith.addf %8, %13 : vector<8x128xf32>
    %15 = vector.extract_strided_slice %3 {offsets = [0, 1], sizes = [8, 1], strides = [1, 1]} : vector<8x8xi32> to vector<8x1xi32>
    %16 = vector.broadcast %15 : vector<8x1xi32> to vector<8x128xi32>
    %17 = arith.cmpi eq, %16, %7 : vector<8x128xi32>
    %18 = arith.extui %17 : vector<8x128xi1> to vector<8x128xi32>
    %19 = arith.sitofp %18 : vector<8x128xi32> to vector<8x128xf32>
    %20 = arith.addf %14, %19 : vector<8x128xf32>
    %21 = vector.extract_strided_slice %3 {offsets = [0, 2], sizes = [8, 1], strides = [1, 1]} : vector<8x8xi32> to vector<8x1xi32>
    %22 = vector.broadcast %21 : vector<8x1xi32> to vector<8x128xi32>
    %23 = arith.cmpi eq, %22, %7 : vector<8x128xi32>
    %24 = arith.extui %23 : vector<8x128xi1> to vector<8x128xi32>
    %25 = arith.sitofp %24 : vector<8x128xi32> to vector<8x128xf32>
    %26 = arith.addf %20, %25 : vector<8x128xf32>
    %27 = vector.extract_strided_slice %3 {offsets = [0, 3], sizes = [8, 1], strides = [1, 1]} : vector<8x8xi32> to vector<8x1xi32>
    %28 = vector.broadcast %27 : vector<8x1xi32> to vector<8x128xi32>
    %29 = arith.cmpi eq, %28, %7 : vector<8x128xi32>
    %30 = arith.extui %29 : vector<8x128xi1> to vector<8x128xi32>
    %31 = arith.sitofp %30 : vector<8x128xi32> to vector<8x128xf32>
    %32 = arith.addf %26, %31 : vector<8x128xf32>
    %33 = vector.extract_strided_slice %3 {offsets = [0, 4], sizes = [8, 1], strides = [1, 1]} : vector<8x8xi32> to vector<8x1xi32>
    %34 = vector.broadcast %33 : vector<8x1xi32> to vector<8x128xi32>
    %35 = arith.cmpi eq, %34, %7 : vector<8x128xi32>
    %36 = arith.extui %35 : vector<8x128xi1> to vector<8x128xi32>
    %37 = arith.sitofp %36 : vector<8x128xi32> to vector<8x128xf32>
    %38 = arith.addf %32, %37 : vector<8x128xf32>
    %39 = vector.extract_strided_slice %3 {offsets = [0, 5], sizes = [8, 1], strides = [1, 1]} : vector<8x8xi32> to vector<8x1xi32>
    %40 = vector.broadcast %39 : vector<8x1xi32> to vector<8x128xi32>
    %41 = arith.cmpi eq, %40, %7 : vector<8x128xi32>
    %42 = arith.extui %41 : vector<8x128xi1> to vector<8x128xi32>
    %43 = arith.sitofp %42 : vector<8x128xi32> to vector<8x128xf32>
    %44 = arith.addf %38, %43 : vector<8x128xf32>
    %45 = vector.extract_strided_slice %3 {offsets = [0, 6], sizes = [8, 1], strides = [1, 1]} : vector<8x8xi32> to vector<8x1xi32>
    %46 = vector.broadcast %45 : vector<8x1xi32> to vector<8x128xi32>
    %47 = arith.cmpi eq, %46, %7 : vector<8x128xi32>
    %48 = arith.extui %47 : vector<8x128xi1> to vector<8x128xi32>
    %49 = arith.sitofp %48 : vector<8x128xi32> to vector<8x128xf32>
    %50 = arith.addf %44, %49 : vector<8x128xf32>
    %51 = vector.extract_strided_slice %3 {offsets = [0, 7], sizes = [8, 1], strides = [1, 1]} : vector<8x8xi32> to vector<8x1xi32>
    %52 = vector.broadcast %51 : vector<8x1xi32> to vector<8x128xi32>
    %53 = arith.cmpi eq, %52, %7 : vector<8x128xi32>
    %54 = arith.extui %53 : vector<8x128xi1> to vector<8x128xi32>
    %55 = arith.sitofp %54 : vector<8x128xi32> to vector<8x128xf32>
    %56 = arith.addf %50, %55 : vector<8x128xf32>
    %c0_2 = arith.constant 0 : index
    %c0_3 = arith.constant 0 : index
    %57 = vector.load %arg7[%c0_2, %c0_3] : memref<8x128xf32, #tpu.memory_space<vmem>>, vector<8x128xf32>
    %c0_4 = arith.constant 0 : index
    %c0_5 = arith.constant 0 : index
    %58 = vector.load %arg3[%c0_4, %c0_5] : memref<128x128xf32, #tpu.memory_space<vmem>>, vector<128x128xf32>
    %cst_6 = arith.constant dense<0.000000e+00> : vector<8x128xf32>
    %59 = tpu.matmul %56, %58, %cst_6 {dimension_numbers = #tpu.dot_dimension_numbers<[1], [0], [0], [1], [0, 0, 1, 1], [], []>} : vector<8x128xf32>, vector<128x128xf32>, vector<8x128xf32> -> vector<8x128xf32>
    %60 = arith.addf %57, %59 : vector<8x128xf32>
    %c0_7 = arith.constant 0 : index
    %c0_8 = arith.constant 0 : index
    %61 = vector.load %arg7[%c0_7, %c0_8] : memref<8x128xf32, #tpu.memory_space<vmem>>, vector<8x128xf32>
    tpu.vector_store %arg7[%c0_7, %c0_8], %60 {strides = array<i32>} : memref<8x128xf32, #tpu.memory_space<vmem>>, vector<8x128xf32>,
    %c0_i32_9 = arith.constant 0 : i32
    %62 = arith.cmpi eq, %arg1, %c0_i32_9 : i32
    %63 = arith.extui %62 : i1 to i32
    %c0_i32_10 = arith.constant 0 : i32
    %64 = arith.cmpi ne, %63, %c0_i32_10 : i32
    scf.if %64 {
      %c0_11 = arith.constant 0 : index
      %c0_12 = arith.constant 0 : index
      %65 = vector.load %arg7[%c0_11, %c0_12] : memref<8x128xf32, #tpu.memory_space<vmem>>, vector<8x128xf32>
      %c0_13 = arith.constant 0 : index
      %c0_14 = arith.constant 0 : index
      %66 = vector.load %arg4[%c0_13, %c0_14] : memref<128x128xf32, #tpu.memory_space<vmem>>, vector<128x128xf32>
      %cst_15 = arith.constant dense<0.000000e+00> : vector<8x128xf32>
      %67 = tpu.matmul %65, %66, %cst_15 {dimension_numbers = #tpu.dot_dimension_numbers<[1], [0], [0], [1], [0, 0, 1, 1], [], []>} : vector<8x128xf32>, vector<128x128xf32>, vector<8x128xf32> -> vector<8x128xf32>
      %cst_16 = arith.constant 1.250000e-01 : f32
      %68 = vector.broadcast %cst_16 : f32 to vector<8x128xf32>
      %69 = arith.mulf %67, %68 : vector<8x128xf32>
      %c0_17 = arith.constant 0 : index
      %c0_18 = arith.constant 0 : index
      %70 = vector.load %arg5[%c0_17, %c0_18] : memref<1x128xf32, #tpu.memory_space<vmem>>, vector<1x128xf32>
      %71 = vector.broadcast %70 : vector<1x128xf32> to vector<8x128xf32>
      %72 = arith.addf %69, %71 : vector<8x128xf32>
      %c0_19 = arith.constant 0 : index
      %c0_20 = arith.constant 0 : index
      %73 = vector.load %arg6[%c0_19, %c0_20] : memref<8x128xf32, #tpu.memory_space<vmem>>, vector<8x128xf32>
      tpu.vector_store %arg6[%c0_19, %c0_20], %72 {strides = array<i32>} : memref<8x128xf32, #tpu.memory_space<vmem>>, vector<8x128xf32>,
    } else {
    }
    return
  }
  func.func @transform_0(%arg0: i32, %arg1: i32) -> (i32, i32) {
    %c0_i32 = arith.constant 0 : i32
    %c0_i32_0 = arith.constant 0 : i32
    return %arg0, %c0_i32 : i32, i32
  }
  func.func @transform_1(%arg0: i32, %arg1: i32) -> (i32, i32) {
    %c0_i32 = arith.constant 0 : i32
    %c0_i32_0 = arith.constant 0 : i32
    return %arg1, %c0_i32 : i32, i32
  }
  func.func @transform_2(%arg0: i32, %arg1: i32) -> (i32, i32) {
    %c0_i32 = arith.constant 0 : i32
    %c0_i32_0 = arith.constant 0 : i32
    %c0_i32_1 = arith.constant 0 : i32
    return %c0_i32, %c0_i32_0 : i32, i32
  }
  func.func @transform_3(%arg0: i32, %arg1: i32) -> (i32, i32) {
    %c0_i32 = arith.constant 0 : i32
    %c0_i32_0 = arith.constant 0 : i32
    %c0_i32_1 = arith.constant 0 : i32
    return %c0_i32, %c0_i32_0 : i32, i32
  }
  func.func @transform_4(%arg0: i32, %arg1: i32) -> (i32, i32) {
    %c0_i32 = arith.constant 0 : i32
    %c0_i32_0 = arith.constant 0 : i32
    return %arg0, %c0_i32 : i32, i32
  }
}

</mosaic_0001>

<llo_original>
// kernel: word_avg_forward.1
$region0: #{word_avg_forward.1}
  #allocation0 [shape = 'u32[]', space=smem, size = 0x4, offset = 0x4, fixed_abs, tag = 'smem constant byte address 0x4 - core index']
  #allocation1 [shape = 'u32[144,128]{1,0:T(1,128)}', space=vmem, size = 0x12000, scoped, tag = 'internal scratch']
  #allocation2 [shape = 'f32[8,128]{1,0:T(8,128)}', space=vmem, size = 0x1000, scoped, tag = 'scratch operand']
  %s0 = inlined_call_operand.vmem [shape: s32[8,8], index: 0, kind: input, shape index: {}]
  %s1 = inlined_call_operand.vmem [shape: f32[128,128], index: 1, kind: input, shape index: {}]
  %s2 = inlined_call_operand.vmem [shape: f32[128,128], index: 2, kind: input, shape index: {}]
  %s3 = inlined_call_operand.vmem [shape: f32[1,128], index: 3, kind: input, shape index: {}]
  %s4 = inlined_call_operand.vmem [shape: f32[8,128], index: 4, kind: output, shape index: {}]
  %s5 = sld [smem:[#allocation0]]
  $region34: #{word_avg_forward.1} parent=0
    _
  %s7 = ssub.s32 1, %s5
  %s8 = scalar_select 0, %s7, %s5
  // Predicated region
  $region2: #{word_avg_forward.1} parent=0 // pred_check
    _
  $region3: #{word_avg_forward.1} parent=0 // pred_check_branch
    %10 = sbr.rel (0) target = $region5
  $region4: #{word_avg_forward.1} parent=0 // pred_region
    _
  $region5: #{word_avg_forward.1} parent=0 // pred_fallthru
    _
  // Predicated region
  $region6: #{word_avg_forward.1} parent=0 // pred_check
    _
  $region7: #{word_avg_forward.1} parent=0 // pred_check_branch
    %12 = sbr.rel (0) target = $region9
  $region8: #{word_avg_forward.1} parent=0 // pred_region
    _
  $region9: #{word_avg_forward.1} parent=0 // pred_fallthru
    _
  // Predicated region
  $region10: #{word_avg_forward.1} parent=0 // pred_check
    _
  $region11: #{word_avg_forward.1} parent=0 // pred_check_branch
    %14 = sbr.rel (0) target = $region13
  $region12: #{word_avg_forward.1} parent=0 // pred_region
    _
  $region13: #{word_avg_forward.1} parent=0 // pred_fallthru
    _
  // Predicated region
  $region14: #{word_avg_forward.1} parent=0 // pred_check
    _
  $region15: #{word_avg_forward.1} parent=0 // pred_check_branch
    %16 = sbr.rel (0) target = $region17
  $region16: #{word_avg_forward.1} parent=0 // pred_region
    _
  $region17: #{word_avg_forward.1} parent=0 // pred_fallthru
    _
  %p17 = scmp.eq.s32.totalorder 0, 0
  // Predicated region
  $region18: #{word_avg_forward.1} parent=0 // pred_check
    %p18 = pneg %p17
  $region19: #{word_avg_forward.1} parent=0 // pred_check_branch
    %20 = sbr.rel (%p18) target = $region21
  $region20: #{word_avg_forward.1} parent=0 // pred_region
    %21 = vst [vmem:[#allocation2] sm:$0xff] 0.0
  $region21: #{word_avg_forward.1} parent=0 // pred_fallthru
    _
  %v22 = vld [vmem:[%s0] sm:$0xff]
  %s23 = smul.u32 0, 128
  %v24 = vlaneseq
  %v25 = vand.u32 %v24, 127
  %v26 = vstv %s23
  %v27 = vadd.s32 %v25, %v26
  %28 = vset.pattern.permute.xlu0 0
  %29 = vperm.xlu0 %28, %v22
  %v30 = vpop.permute.xlu0 %29
  %vm31 = vcmp.eq.s32.totalorder %v30, %v27
  %v32 = vsel %vm31, 1, 0
  %v33 = vcvt.s32.f32 %v32
  %v34 = vadd.f32 %v33, 0.0
  %35 = vset.pattern.permute.xlu0 1
  %36 = vperm.xlu0 %35, %v22
  %v37 = vpop.permute.xlu0 %36
  %vm38 = vcmp.eq.s32.totalorder %v37, %v27
  %v39 = vsel %vm38, 1, 0
  %v40 = vcvt.s32.f32 %v39
  %v41 = vadd.f32 %v34, %v40
  %42 = vset.pattern.permute.xlu0 2
  %43 = vperm.xlu0 %42, %v22
  %v44 = vpop.permute.xlu0 %43
  %vm45 = vcmp.eq.s32.totalorder %v44, %v27
  %v46 = vsel %vm45, 1, 0
  %v47 = vcvt.s32.f32 %v46
  %v48 = vadd.f32 %v41, %v47
  %49 = vset.pattern.permute.xlu0 3
  %50 = vperm.xlu0 %49, %v22
  %v51 = vpop.permute.xlu0 %50
  %vm52 = vcmp.eq.s32.totalorder %v51, %v27
  %v53 = vsel %vm52, 1, 0
  %v54 = vcvt.s32.f32 %v53
  %v55 = vadd.f32 %v48, %v54
  %56 = vset.pattern.permute.xlu0 4
  %57 = vperm.xlu0 %56, %v22
  %v58 = vpop.permute.xlu0 %57
  %vm59 = vcmp.eq.s32.totalorder %v58, %v27
  %v60 = vsel %vm59, 1, 0
  %v61 = vcvt.s32.f32 %v60
  %v62 = vadd.f32 %v55, %v61
  %63 = vset.pattern.permute.xlu0 5
  %64 = vperm.xlu0 %63, %v22
  %v65 = vpop.permute.xlu0 %64
  %vm66 = vcmp.eq.s32.totalorder %v65, %v27
  %v67 = vsel %vm66, 1, 0
  %v68 = vcvt.s32.f32 %v67
  %v69 = vadd.f32 %v62, %v68
  %70 = vset.pattern.permute.xlu0 6
  %71 = vperm.xlu0 %70, %v22
  %v72 = vpop.permute.xlu0 %71
  %vm73 = vcmp.eq.s32.totalorder %v72, %v27
  %v74 = vsel %vm73, 1, 0
  %v75 = vcvt.s32.f32 %v74
  %v76 = vadd.f32 %v69, %v75
  %77 = vset.pattern.permute.xlu0 7
  %78 = vperm.xlu0 %77, %v22
  %v79 = vpop.permute.xlu0 %78
  %vm80 = vcmp.eq.s32.totalorder %v79, %v27
  %v81 = vsel %vm80, 1, 0
  %v82 = vcvt.s32.f32 %v81
  %v83 = vadd.f32 %v76, %v82
  %v84 = vld [vmem:[#allocation2] sm:$0xff]
  %v85 = vld [vmem:[%s1] sm:$0xff]
  %v86 = vld [vmem:[%s1 + $0x8] sm:$0xff]
  %v87 = vld [vmem:[%s1 + $0x10] sm:$0xff]
  %v88 = vld [vmem:[%s1 + $0x18] sm:$0xff]
  %v89 = vld [vmem:[%s1 + $0x20] sm:$0xff]
  %v90 = vld [vmem:[%s1 + $0x28] sm:$0xff]
  %v91 = vld [vmem:[%s1 + $0x30] sm:$0xff]
  %v92 = vld [vmem:[%s1 + $0x38] sm:$0xff]
  %v93 = vld [vmem:[%s1 + $0x40] sm:$0xff]
  %v94 = vld [vmem:[%s1 + $0x48] sm:$0xff]
  %v95 = vld [vmem:[%s1 + $0x50] sm:$0xff]
  %v96 = vld [vmem:[%s1 + $0x58] sm:$0xff]
  %v97 = vld [vmem:[%s1 + $0x60] sm:$0xff]
  %v98 = vld [vmem:[%s1 + $0x68] sm:$0xff]
  %v99 = vld [vmem:[%s1 + $0x70] sm:$0xff]
  %v100 = vld [vmem:[%s1 + $0x78] sm:$0xff]
  %101 = vmatprep.subr.mxu0 0.0
  %102 = vmatpush1.msra.mxu0 %v100
  %103 = vmatprep.subr.mxu0 0.0
  %104 = vmatpush1.msra.mxu0 %v99
  %105 = vmatprep.subr.mxu0 0.0
  %106 = vmatpush1.msra.mxu0 %v98
  %107 = vmatprep.subr.mxu0 0.0
  %108 = vmatpush1.msra.mxu0 %v97
  %109 = vmatprep.subr.mxu0 0.0
  %110 = vmatpush1.msra.mxu0 %v96
  %111 = vmatprep.subr.mxu0 0.0
  %112 = vmatpush1.msra.mxu0 %v95
  %113 = vmatprep.subr.mxu0 0.0
  %114 = vmatpush1.msra.mxu0 %v94
  %115 = vmatprep.subr.mxu0 0.0
  %116 = vmatpush1.msra.mxu0 %v93
  %117 = vmatprep.subr.mxu0 0.0
  %118 = vmatpush1.msra.mxu0 %v92
  %119 = vmatprep.subr.mxu0 0.0
  %120 = vmatpush1.msra.mxu0 %v91
  %121 = vmatprep.subr.mxu0 0.0
  %122 = vmatpush1.msra.mxu0 %v90
  %123 = vmatprep.subr.mxu0 0.0
  %124 = vmatpush1.msra.mxu0 %v89
  %125 = vmatprep.subr.mxu0 0.0
  %126 = vmatpush1.msra.mxu0 %v88
  %127 = vmatprep.subr.mxu0 0.0
  %128 = vmatpush1.msra.mxu0 %v87
  %129 = vmatprep.subr.mxu0 0.0
  %130 = vmatpush1.msra.mxu0 %v86
  %131 = vmatprep.subr.mxu0 0.0
  %132 = vmatpush1.msra.mxu0 %v85
  %133 = vmatprep.subr.mxu0 0.0
  %134 = vmatpush2.msra.mxu0 0.0
  %135 = vmatprep.subr.mxu0 0.0
  %136 = vmatpush2.msra.mxu0 0.0
  %137 = vmatprep.subr.mxu0 0.0
  %138 = vmatpush2.msra.mxu0 0.0
  %139 = vmatprep.subr.mxu0 0.0
  %140 = vmatpush2.msra.mxu0 0.0
  %141 = vmatprep.subr.mxu0 0.0
  %142 = vmatpush2.msra.mxu0 0.0
  %143 = vmatprep.subr.mxu0 0.0
  %144 = vmatpush2.msra.mxu0 0.0
  %145 = vmatprep.subr.mxu0 0.0
  %146 = vmatpush2.msra.mxu0 0.0
  %147 = vmatprep.subr.mxu0 0.0
  %148 = vmatpush2.msra.mxu0 0.0
  %149 = vmatprep.subr.mxu0 0.0
  %150 = vmatpush2.msra.mxu0 0.0
  %151 = vmatprep.subr.mxu0 0.0
  %152 = vmatpush2.msra.mxu0 0.0
  %153 = vmatprep.subr.mxu0 0.0
  %154 = vmatpush2.msra.mxu0 0.0
  %155 = vmatprep.subr.mxu0 0.0
  %156 = vmatpush2.msra.mxu0 0.0
  %157 = vmatprep.subr.mxu0 0.0
  %158 = vmatpush2.msra.mxu0 0.0
  %159 = vmatprep.subr.mxu0 0.0
  %160 = vmatpush2.msra.mxu0 0.0
  %161 = vmatprep.subr.mxu0 0.0
  %162 = vmatpush2.msra.mxu0 0.0
  %163 = vmatprep.subr.mxu0 0.0
  %164 = vmatpush2.msra.mxu0 0.0
  %165 = vmatprep.mubr.f32.mxu0 0.0
  %166 = vmatmul.mubr.f32.gmra.mxu0 %v83
  %v167 = vpop.f32.mrf.mxu0
  %v168 = vadd.f32 0.0, %v167
  %v169 = vpop.f32.mrf.mxu0
  %170 = vdwg.mxu0
  %v171 = vadd.f32 %v84, %v168
  %172 = vst [vmem:[#allocation2] sm:$0xff] %v171
  // Predicated region
  $region22: #{word_avg_forward.1} parent=0 // pred_check
    %p173 = pneg %p17
  $region23: #{word_avg_forward.1} parent=0 // pred_check_branch
    %175 = sbr.rel (%p173) target = $region25
  $region24: #{word_avg_forward.1} parent=0 // pred_region
    %v176 = vld [vmem:[#allocation2] sm:$0xff]
    %v177 = vld [vmem:[%s2] sm:$0xff]
    %v178 = vld [vmem:[%s2 + $0x8] sm:$0xff]
    %v179 = vld [vmem:[%s2 + $0x10] sm:$0xff]
    %v180 = vld [vmem:[%s2 + $0x18] sm:$0xff]
    %v181 = vld [vmem:[%s2 + $0x20] sm:$0xff]
    %v182 = vld [vmem:[%s2 + $0x28] sm:$0xff]
    %v183 = vld [vmem:[%s2 + $0x30] sm:$0xff]
    %v184 = vld [vmem:[%s2 + $0x38] sm:$0xff]
    %v185 = vld [vmem:[%s2 + $0x40] sm:$0xff]
    %v186 = vld [vmem:[%s2 + $0x48] sm:$0xff]
    %v187 = vld [vmem:[%s2 + $0x50] sm:$0xff]
    %v188 = vld [vmem:[%s2 + $0x58] sm:$0xff]
    %v189 = vld [vmem:[%s2 + $0x60] sm:$0xff]
    %v190 = vld [vmem:[%s2 + $0x68] sm:$0xff]
    %v191 = vld [vmem:[%s2 + $0x70] sm:$0xff]
    %v192 = vld [vmem:[%s2 + $0x78] sm:$0xff]
    %193 = vmatprep.subr.mxu0 0.0
    %194 = vmatpush1.msra.mxu0 %v192
    %195 = vmatprep.subr.mxu0 0.0
    %196 = vmatpush1.msra.mxu0 %v191
    %197 = vmatprep.subr.mxu0 0.0
    %198 = vmatpush1.msra.mxu0 %v190
    %199 = vmatprep.subr.mxu0 0.0
    %200 = vmatpush1.msra.mxu0 %v189
    %201 = vmatprep.subr.mxu0 0.0
    %202 = vmatpush1.msra.mxu0 %v188
    %203 = vmatprep.subr.mxu0 0.0
    %204 = vmatpush1.msra.mxu0 %v187
    %205 = vmatprep.subr.mxu0 0.0
    %206 = vmatpush1.msra.mxu0 %v186
    %207 = vmatprep.subr.mxu0 0.0
    %208 = vmatpush1.msra.mxu0 %v185
    %209 = vmatprep.subr.mxu0 0.0
    %210 = vmatpush1.msra.mxu0 %v184
    %211 = vmatprep.subr.mxu0 0.0
    %212 = vmatpush1.msra.mxu0 %v183
    %213 = vmatprep.subr.mxu0 0.0
    %214 = vmatpush1.msra.mxu0 %v182
    %215 = vmatprep.subr.mxu0 0.0
    %216 = vmatpush1.msra.mxu0 %v181
    %217 = vmatprep.subr.mxu0 0.0
    %218 = vmatpush1.msra.mxu0 %v180
    %219 = vmatprep.subr.mxu0 0.0
    %220 = vmatpush1.msra.mxu0 %v179
    %221 = vmatprep.subr.mxu0 0.0
    %222 = vmatpush1.msra.mxu0 %v178
    %223 = vmatprep.subr.mxu0 0.0
    %224 = vmatpush1.msra.mxu0 %v177
    %225 = vmatprep.subr.mxu0 0.0
    %226 = vmatpush2.msra.mxu0 0.0
    %227 = vmatprep.subr.mxu0 0.0
    %228 = vmatpush2.msra.mxu0 0.0
    %229 = vmatprep.subr.mxu0 0.0
    %230 = vmatpush2.msra.mxu0 0.0
    %231 = vmatprep.subr.mxu0 0.0
    %232 = vmatpush2.msra.mxu0 0.0
    %233 = vmatprep.subr.mxu0 0.0
    %234 = vmatpush2.msra.mxu0 0.0
    %235 = vmatprep.subr.mxu0 0.0
    %236 = vmatpush2.msra.mxu0 0.0
    %237 = vmatprep.subr.mxu0 0.0
    %238 = vmatpush2.msra.mxu0 0.0
    %239 = vmatprep.subr.mxu0 0.0
    %240 = vmatpush2.msra.mxu0 0.0
    %241 = vmatprep.subr.mxu0 0.0
    %242 = vmatpush2.msra.mxu0 0.0
    %243 = vmatprep.subr.mxu0 0.0
    %244 = vmatpush2.msra.mxu0 0.0
    %245 = vmatprep.subr.mxu0 0.0
    %246 = vmatpush2.msra.mxu0 0.0
    %247 = vmatprep.subr.mxu0 0.0
    %248 = vmatpush2.msra.mxu0 0.0
    %249 = vmatprep.subr.mxu0 0.0
    %250 = vmatpush2.msra.mxu0 0.0
    %251 = vmatprep.subr.mxu0 0.0
    %252 = vmatpush2.msra.mxu0 0.0
    %253 = vmatprep.subr.mxu0 0.0
    %254 = vmatpush2.msra.mxu0 0.0
    %255 = vmatprep.subr.mxu0 0.0
    %256 = vmatpush2.msra.mxu0 0.0
    %257 = vmatprep.mubr.f32.mxu0 0.0
    %258 = vmatmul.mubr.f32.gmra.mxu0 %v176
    %v259 = vpop.f32.mrf.mxu0
    %v260 = vadd.f32 0.0, %v259
    %v261 = vpop.f32.mrf.mxu0
    %262 = vdwg.mxu0
    %v263 = vmul.f32 %v260, 0.125
    %v264 = vld [vmem:[%s3] sm:$0x1]
    %v266 = vlaneseq
    %v267 = vshrl.u32 %v266, 7
    %v268 = vsub.s32 0, %v267
    %v269 = vrot.slane %v264, %v268
    %v271 = vadd.f32 %v263, %v269
    %272 = vst [vmem:[%s4] sm:$0xff] %v271
  $region25: #{word_avg_forward.1} parent=0 // pred_fallthru
    _
  // Predicated region
  $region26: #{word_avg_forward.1} parent=0 // pred_check
    _
  $region27: #{word_avg_forward.1} parent=0 // pred_check_branch
    %274 = sbr.rel (0) target = $region29
  $region28: #{word_avg_forward.1} parent=0 // pred_region
    _
  $region29: #{word_avg_forward.1} parent=0 // pred_fallthru
    _
  // Predicated region
  $region30: #{word_avg_forward.1} parent=0 // pred_check
    _
  $region31: #{word_avg_forward.1} parent=0 // pred_check_branch
    %276 = sbr.rel (0) target = $region33
  $region32: #{word_avg_forward.1} parent=0 // pred_region
    _
  $region33: #{word_avg_forward.1} parent=0 // pred_fallthru
    _

</llo_original>
